<compile_context>
chip_gen: v6e
topology: v6e:2x2x1
jax: 0.10.0
libtpu: 0.0.40
codegen_flags: <defaults>
</compile_context>

<pallas_src>
import math

import jax
import jax.numpy as jnp
from jax.experimental import pallas as pl
from jax.experimental.pallas import tpu as pltpu

_LANES = 512            # lane-dense width (multiple of 128)
_MAX_BLOCK_ROWS = 2048  # rows per grid step (multiple of 8); f32 block = 4 MiB


def _round_up(a, m):
    return ((a + m - 1) // m) * m


def _mish_kernel(x_ref, o_ref):
    # x_ref / o_ref: VMEM (block_rows, _LANES)
    x = x_ref[...].astype(jnp.float32)
    # Rational form of tanh(softplus(x)) — one EUP op (exp) per element.
    u = jnp.exp(-jnp.abs(x))
    u2 = u * u
    pos = x >= 0.0
    num = jnp.where(pos, 1.0 + 2.0 * u, 2.0 * u + u2)
    den = jnp.where(pos, 1.0 + 2.0 * u + 2.0 * u2, 2.0 + 2.0 * u + u2)
    if jnp.dtype(o_ref.dtype) == jnp.dtype(jnp.float32):
        t = num / den                              # exact: keep f32 1e-5 tol
    else:
        t = num * pl.reciprocal(den, approx=True)  # EUP vrcp, fine for bf16
    o_ref[...] = (x * t).astype(o_ref.dtype)


def mish_pallas(x):
    """Elementwise Mish. Any shape / float dtype; returns same shape/dtype."""
    orig_shape = x.shape
    n = math.prod(orig_shape)

    lanes = _LANES
    rows = pl.cdiv(n, lanes)
    rows_padded = _round_up(rows, 8)          # sublane-aligned row count
    total = rows_padded * lanes

    # Cap block_rows at ~half the rows (rounded to 8) so v7x gets >=2 grid
    # steps to shard across its two TensorCores; neutral on v5e/v6e.
    block_rows = min(_MAX_BLOCK_ROWS, _round_up(pl.cdiv(rows_padded, 2), 8))
    grid = pl.cdiv(rows_padded, block_rows)   # partial last block is masked

    xf = x.reshape(-1)
    pad = total - n
    if pad:
        # mish(0) == 0, so zero padding is numerically safe. When pad == 0
        # the reshapes below are free bitcasts (no extra HBM pass).
        xf = jnp.pad(xf, (0, pad))
    x2d = xf.reshape(rows_padded, lanes)

    itemsize = jnp.dtype(x.dtype).itemsize
    cost = pl.CostEstimate(
        flops=10 * total,
        transcendentals=total,
        bytes_accessed=2 * total * itemsize,
    )

    out2d = pl.pallas_call(
        _mish_kernel,
        out_shape=jax.ShapeDtypeStruct((rows_padded, lanes), x.dtype),
        grid=(grid,),
        in_specs=[pl.BlockSpec((block_rows, lanes), lambda i: (i, 0))],
        out_specs=pl.BlockSpec((block_rows, lanes), lambda i: (i, 0)),
        compiler_params=pltpu.CompilerParams(
            dimension_semantics=("parallel",),
            vmem_limit_bytes=32 << 20,
        ),
        cost_estimate=cost,
    )(x2d)

    out_flat = out2d.reshape(-1)
    if pad:
        out_flat = out_flat[:n]
    return out_flat.reshape(orig_shape)


def mish_reference(x):
    xf = x.astype(jnp.float32)
    return (xf * jnp.tanh(jax.nn.softplus(xf))).astype(x.dtype)


if __name__ == "__main__":
    key = jax.random.PRNGKey(0)
    # small NCHW-style input consistent with the module's usage
    x = jax.random.normal(key, (2, 4, 16, 16), dtype=jnp.float32) * 3.0

    out = mish_pallas(x)
    out = jax.block_until_ready(out)

    ref = mish_reference(x)
    assert out.shape == x.shape, out.shape
    assert jnp.allclose(out, ref, atol=1e-5, rtol=1e-5), (
        float(jnp.max(jnp.abs(out - ref)))
    )
    print("KERNEL_OK")
</pallas_src>

<mosaic_0001>
module attributes {stable_mosaic.version = 11 : i64} {
  func.func @_mish_kernel(%arg0: i32, %arg1: memref<8x512xf32, #tpu.memory_space<vmem>>, %arg2: memref<8x512xf32, #tpu.memory_space<vmem>>) attributes {dimension_semantics = [#tpu.dimension_semantics<parallel>], iteration_bounds = array<i64: 1>, scalar_prefetch = 0 : i64, scratch_operands = 0 : i64, tpu.core_type = #tpu.core_type<tc>, window_params = [{transform_indices = @transform_0, window_bounds = array<i64: 8, 512>}, {transform_indices = @transform_1, window_bounds = array<i64: 8, 512>}]} {
    %c0 = arith.constant 0 : index
    %c0_0 = arith.constant 0 : index
    %0 = vector.load %arg1[%c0, %c0_0] : memref<8x512xf32, #tpu.memory_space<vmem>>, vector<8x512xf32>
    %1 = math.absf %0 : vector<8x512xf32>
    %cst = arith.constant 0.000000e+00 : f32
    %2 = vector.broadcast %cst : f32 to vector<8x512xf32>
    %3 = arith.subf %2, %1 : vector<8x512xf32>
    %4 = math.exp %3 : vector<8x512xf32>
    %5 = arith.mulf %4, %4 : vector<8x512xf32>
    %cst_1 = arith.constant 0.000000e+00 : f32
    %6 = vector.broadcast %cst_1 : f32 to vector<8x512xf32>
    %7 = arith.cmpf oge, %0, %6 : vector<8x512xf32>
    %cst_2 = arith.constant 2.000000e+00 : f32
    %8 = vector.broadcast %cst_2 : f32 to vector<8x512xf32>
    %9 = arith.mulf %8, %4 : vector<8x512xf32>
    %cst_3 = arith.constant 1.000000e+00 : f32
    %10 = vector.broadcast %cst_3 : f32 to vector<8x512xf32>
    %11 = arith.addf %10, %9 : vector<8x512xf32>
    %cst_4 = arith.constant 2.000000e+00 : f32
    %12 = vector.broadcast %cst_4 : f32 to vector<8x512xf32>
    %13 = arith.mulf %12, %4 : vector<8x512xf32>
    %14 = arith.addf %13, %5 : vector<8x512xf32>
    %15 = arith.select %7, %11, %14 : vector<8x512xi1>, vector<8x512xf32>
    %cst_5 = arith.constant 2.000000e+00 : f32
    %16 = vector.broadcast %cst_5 : f32 to vector<8x512xf32>
    %17 = arith.mulf %16, %4 : vector<8x512xf32>
    %cst_6 = arith.constant 1.000000e+00 : f32
    %18 = vector.broadcast %cst_6 : f32 to vector<8x512xf32>
    %19 = arith.addf %18, %17 : vector<8x512xf32>
    %cst_7 = arith.constant 2.000000e+00 : f32
    %20 = vector.broadcast %cst_7 : f32 to vector<8x512xf32>
    %21 = arith.mulf %20, %5 : vector<8x512xf32>
    %22 = arith.addf %19, %21 : vector<8x512xf32>
    %cst_8 = arith.constant 2.000000e+00 : f32
    %23 = vector.broadcast %cst_8 : f32 to vector<8x512xf32>
    %24 = arith.mulf %23, %4 : vector<8x512xf32>
    %cst_9 = arith.constant 2.000000e+00 : f32
    %25 = vector.broadcast %cst_9 : f32 to vector<8x512xf32>
    %26 = arith.addf %25, %24 : vector<8x512xf32>
    %27 = arith.addf %26, %5 : vector<8x512xf32>
    %28 = arith.select %7, %22, %27 : vector<8x512xi1>, vector<8x512xf32>
    %29 = arith.divf %15, %28 : vector<8x512xf32>
    %30 = arith.mulf %0, %29 : vector<8x512xf32>
    %c0_10 = arith.constant 0 : index
    %c0_11 = arith.constant 0 : index
    %31 = vector.load %arg2[%c0_10, %c0_11] : memref<8x512xf32, #tpu.memory_space<vmem>>, vector<8x512xf32>
    tpu.vector_store %arg2[%c0_10, %c0_11], %30 {strides = array<i32>} : memref<8x512xf32, #tpu.memory_space<vmem>>, vector<8x512xf32>,
    return
  }
  func.func @transform_0(%arg0: i32) -> (i32, i32) {
    %c0_i32 = arith.constant 0 : i32
    %c0_i32_0 = arith.constant 0 : i32
    return %arg0, %c0_i32 : i32, i32
  }
  func.func @transform_1(%arg0: i32) -> (i32, i32) {
    %c0_i32 = arith.constant 0 : i32
    %c0_i32_0 = arith.constant 0 : i32
    return %arg0, %c0_i32 : i32, i32
  }
}

</mosaic_0001>

<llo_original>
// kernel: tpu_custom_call.1
$region0: #{tpu_custom_call.1}
  #allocation0 [shape = 'u32[]', space=smem, size = 0x4, offset = 0x4, fixed_abs, tag = 'smem constant byte address 0x4 - core index']
  #allocation1 [shape = 'u32[144,128]{1,0:T(1,128)}', space=vmem, size = 0x12000, scoped, tag = 'internal scratch']
  %s0 = inlined_call_operand.hbm [shape: f32[8,512], index: 0, kind: input, shape index: {}]
  %s1 = inlined_call_operand.hbm [shape: f32[8,512], index: 1, kind: output, shape index: {}]
  %s2 = sld [smem:[#allocation0]]
  $region18: #{tpu_custom_call.1} parent=0
    _
  %s4 = ssub.s32 1, %s2
  %s5 = scalar_select 0, %s4, %s2
  $region1: #{tpu_custom_call.1} parent=0
    #allocation2 [shape = 'u8[16384]{0}', space=vmem, size = 0x4000, scoped, tag = 'input window, operand 0, single buffered']
    #allocation3 [shape = 's32[1]{0}', space=sflag, size = 0x4, scoped, tag = 'scoped memory for tpu_custom_call.1']
    #allocation4 [shape = 's32[1]{0}', space=sflag, size = 0x4, scoped, tag = 'scoped memory for tpu_custom_call.1']
    #allocation5 [shape = 'u8[16384]{0}', space=vmem, size = 0x4000, scoped, tag = 'output window, operand 0, single buffered']
    %6 = vsyncpa [#allocation3], 0
    %7 = vsyncpa [#allocation4], 0
    // Predicated region
    $region2: #{tpu_custom_call.1} parent=1 // pred_check
      _
    $region3: #{tpu_custom_call.1} parent=1 // pred_check_branch
      %9 = sbr.rel (0) target = $region5
    $region4: #{tpu_custom_call.1} parent=1 // pred_region
      %s11 = ssub.s32 512, 512
      %12 = vsyncadd [#allocation3], %s11
      %s14 = sshll.u32 [#allocation2], 4
      %s15 = int_to_ptr.vmem [resolvable:$true] %s14
      %17 = dma.hbm_to_vmem [thread:$0]  %s0, 512, %s15, [#allocation3]
    $region5: #{tpu_custom_call.1} parent=1 // pred_fallthru
      _
    // Predicated region
    $region6: #{tpu_custom_call.1} parent=1 // pred_check
      _
    $region7: #{tpu_custom_call.1} parent=1 // pred_check_branch
      %19 = sbr.rel (0) target = $region9
    $region8: #{tpu_custom_call.1} parent=1 // pred_region
      %20 = dma.done [#allocation3], 512
    $region9: #{tpu_custom_call.1} parent=1 // pred_fallthru
      _
    %v21 = vld [vmem:[#allocation2] sm:$0xff]
    %v22 = vld [vmem:[#allocation2 + $0x8] sm:$0xff]
    %v23 = vld [vmem:[#allocation2 + $0x10] sm:$0xff]
    %v24 = vld [vmem:[#allocation2 + $0x18] sm:$0xff]
    %v25 = vand.u32 2147483647, %v21
    %v26 = vand.u32 2147483647, %v22
    %v27 = vand.u32 2147483647, %v23
    %v28 = vand.u32 2147483647, %v24
    %v29 = vsub.f32 0.0, %v25
    %v30 = vsub.f32 0.0, %v26
    %v31 = vsub.f32 0.0, %v27
    %v32 = vsub.f32 0.0, %v28
    %v33 = vmul.f32 %v29, 1.442695
    %v34 = vpow.pop %v33
    %v35 = vmul.f32 %v30, 1.442695
    %v36 = vpow.pop %v35
    %v37 = vmul.f32 %v31, 1.442695
    %v38 = vpow.pop %v37
    %v39 = vmul.f32 %v32, 1.442695
    %v40 = vpow.pop %v39
    %v41 = vmul.f32 %v34, %v34
    %v42 = vmul.f32 %v36, %v36
    %v43 = vmul.f32 %v38, %v38
    %v44 = vmul.f32 %v40, %v40
    %vm45 = vcmp.ge.f32.partialorder %v21, 0.0
    %vm46 = vcmp.ge.f32.partialorder %v22, 0.0
    %vm47 = vcmp.ge.f32.partialorder %v23, 0.0
    %vm48 = vcmp.ge.f32.partialorder %v24, 0.0
    %v49 = vmul.f32 %v34, 2.0
    %v50 = vmul.f32 %v36, 2.0
    %v51 = vmul.f32 %v38, 2.0
    %v52 = vmul.f32 %v40, 2.0
    %v53 = vadd.f32 %v49, 1.0
    %v54 = vadd.f32 %v50, 1.0
    %v55 = vadd.f32 %v51, 1.0
    %v56 = vadd.f32 %v52, 1.0
    %v57 = vadd.f32 %v49, %v41
    %v58 = vadd.f32 %v50, %v42
    %v59 = vadd.f32 %v51, %v43
    %v60 = vadd.f32 %v52, %v44
    %v61 = vsel %vm45, %v53, %v57
    %v62 = vsel %vm46, %v54, %v58
    %v63 = vsel %vm47, %v55, %v59
    %v64 = vsel %vm48, %v56, %v60
    %v65 = vmul.f32 %v41, 2.0
    %v66 = vmul.f32 %v42, 2.0
    %v67 = vmul.f32 %v43, 2.0
    %v68 = vmul.f32 %v44, 2.0
    %v69 = vadd.f32 %v53, %v65
    %v70 = vadd.f32 %v54, %v66
    %v71 = vadd.f32 %v55, %v67
    %v72 = vadd.f32 %v56, %v68
    %v73 = vadd.f32 %v49, 2.0
    %v74 = vadd.f32 %v50, 2.0
    %v75 = vadd.f32 %v51, 2.0
    %v76 = vadd.f32 %v52, 2.0
    %v77 = vadd.f32 %v73, %v41
    %v78 = vadd.f32 %v74, %v42
    %v79 = vadd.f32 %v75, %v43
    %v80 = vadd.f32 %v76, %v44
    %v81 = vsel %vm45, %v69, %v77
    %v82 = vsel %vm46, %v70, %v78
    %v83 = vsel %vm47, %v71, %v79
    %v84 = vsel %vm48, %v72, %v80
    %v85 = vrcp.pop %v81
    %v86 = vmul.f32 %v61, %v85
    %v87 = vrcp.pop %v82
    %v88 = vmul.f32 %v62, %v87
    %v89 = vrcp.pop %v83
    %v90 = vmul.f32 %v63, %v89
    %v91 = vrcp.pop %v84
    %v92 = vmul.f32 %v64, %v91
    %v93 = vmul.f32 %v21, %v86
    %v94 = vmul.f32 %v22, %v88
    %v95 = vmul.f32 %v23, %v90
    %v96 = vmul.f32 %v24, %v92
    %97 = vst [vmem:[#allocation5] sm:$0xff] %v93
    %98 = vst [vmem:[#allocation5 + $0x8] sm:$0xff] %v94
    %99 = vst [vmem:[#allocation5 + $0x10] sm:$0xff] %v95
    %100 = vst [vmem:[#allocation5 + $0x18] sm:$0xff] %v96
    // Predicated region
    $region10: #{tpu_custom_call.1} parent=1 // pred_check
      _
    $region11: #{tpu_custom_call.1} parent=1 // pred_check_branch
      %102 = sbr.rel (0) target = $region13
    $region12: #{tpu_custom_call.1} parent=1 // pred_region
      %s104 = ssub.s32 512, 512
      %105 = vsyncadd [#allocation4], %s104
      %s107 = sshll.u32 [#allocation5], 4
      %s108 = int_to_ptr.vmem [resolvable:$true] %s107
      %110 = dma.vmem_to_hbm [thread:$0]  %s108, 512, %s1, [#allocation4]
    $region13: #{tpu_custom_call.1} parent=1 // pred_fallthru
      _
    // Predicated region
    $region14: #{tpu_custom_call.1} parent=1 // pred_check
      _
    $region15: #{tpu_custom_call.1} parent=1 // pred_check_branch
      %112 = sbr.rel (0) target = $region17
    $region16: #{tpu_custom_call.1} parent=1 // pred_region
      %113 = dma.done [#allocation4], 512
    $region17: #{tpu_custom_call.1} parent=1 // pred_fallthru
      _
    %114 = vsyncpa [#allocation3], 1
    %115 = vsyncpa [#allocation4], 1

</llo_original>
